<compile_context>
chip_gen: v7x
topology: tpu7x:2x2x1
jax: 0.10.0
libtpu: 0.0.40
codegen_flags: <defaults>
</compile_context>

<pallas_src>
from functools import partial

import jax
import jax.numpy as jnp
import numpy as np
from jax.experimental import pallas as pl
from jax.experimental.pallas import tpu as pltpu


def _round_up(a, b):
    return (a + b - 1) // b * b


def _stats_kernel(x_ref, w_ref, s1_ref, s2_ref, *, TT, n_even, n_odd):
    """Pass 1: per-(batch, tile) partial sum / sum-of-squares of the conv output.

    x_ref block : (1, KC_pad, 2*TT) bf16   lanes [0,TT) = even phase, [TT,2TT) = odd phase
    w_ref block : (C_out, KC_pad)   bf16
    s1/s2 block : (1, 1, C_out, 1)  f32    partial sums, reduced in the wrapper glue
    """
    t = pl.program_id(1)
    # One fused matmul for all K taps and both pooling phases; f32 accumulation.
    acc = jnp.dot(w_ref[...], x_ref[0], preferred_element_type=jnp.float32)  # (C_out, 2*TT)
    lane = jax.lax.broadcasted_iota(jnp.int32, (1, acc.shape[1]), 1)
    pooled = t * TT + jnp.where(lane < TT, lane, lane - TT)   # pooled-time index per lane
    limit = jnp.where(lane < TT, n_even, n_odd)               # #valid conv outputs per phase
    z = jnp.where(pooled < limit, acc, 0.0)                   # mask padded / invalid columns
    s1_ref[0, 0] = jnp.sum(z, axis=1, keepdims=True)
    s2_ref[0, 0] = jnp.sum(z * z, axis=1, keepdims=True)


def _fused_kernel(x_ref, w_ref, sc_ref, sh_ref, o_ref, *, TT):
    """Pass 2: conv (one matmul) -> BN affine -> ReLU -> 2->1 max-pool (lane-half max)."""
    acc = jnp.dot(w_ref[...], x_ref[0], preferred_element_type=jnp.float32)  # (C_out, 2*TT)
    z = jnp.maximum(acc * sc_ref[...] + sh_ref[...], 0.0)
    o_ref[0] = jnp.maximum(z[:, :TT], z[:, TT:])              # even/odd phase max (pool)


@partial(jax.jit, static_argnames=("stride", "padding", "eps"))
def cnn_feature_extractor(x, weight, bias, gamma, beta, *, stride, padding, eps=1e-5):
    """x: (N, C_in, L) f32 (PyTorch NCL). Returns (N, C_out, L_out // 2) f32, PyTorch layout."""
    del bias  # cancels exactly under training-mode BatchNorm (batch-mean subtraction)
    N, C_in, L = x.shape
    C_out, _, K = weight.shape
    s = int(stride)
    L_out = (L + 2 * padding - K) // s + 1
    assert L_out >= 2, "need at least 2 conv outputs for MaxPool1d(2, 2)"
    Lp = L_out // 2                 # pooled output length
    n_even = (L_out + 1) // 2       # conv outputs at even times (incl. tail dropped by pool)
    n_odd = L_out // 2              # conv outputs at odd times
    KC = K * C_in
    KC_pad = _round_up(KC, 16)      # bf16 sublane packing alignment for the contraction dim

    TT = min(1024, _round_up(n_even, 128))      # pooled-time tile (lane axis), 128-multiple
    Lp_pad = _round_up(n_even, TT)
    T_tiles = Lp_pad // TT

    # ---- wrapper glue: zero-pad + tap-stacked / phase-concatenated bf16 slab -------------
    x_len = max(L + 2 * padding, (s + K - 1) + 2 * s * (Lp_pad - 1) + 1)
    x_pad = jnp.pad(x.astype(jnp.float32),
                    ((0, 0), (0, 0), (padding, x_len - L - padding))).astype(jnp.bfloat16)
    stop = 2 * s * (Lp_pad - 1) + 1
    # rows ordered (tap k, channel c); even phase offsets k, odd phase offsets s + k
    slab_e = jnp.concatenate(
        [x_pad[:, :, k:k + stop:2 * s] for k in range(K)], axis=1)           # (N, KC, Lp_pad)
    slab_o = jnp.concatenate(
        [x_pad[:, :, s + k:s + k + stop:2 * s] for k in range(K)], axis=1)   # (N, KC, Lp_pad)
    slab = jnp.stack([slab_e.reshape(N, KC, T_tiles, TT),
                      slab_o.reshape(N, KC, T_tiles, TT)], axis=3)
    slab = slab.reshape(N, KC, T_tiles * 2 * TT)      # per tile: [even TT | odd TT] lanes
    slab = jnp.pad(slab, ((0, 0), (0, KC_pad - KC), (0, 0)))                 # zero rows

    w_flat = jnp.transpose(weight.astype(jnp.float32), (0, 2, 1)).reshape(C_out, KC)
    w_flat = jnp.pad(w_flat, ((0, 0), (0, KC_pad - KC))).astype(jnp.bfloat16)

    grid = (N, T_tiles)
    x_spec = pl.BlockSpec((1, KC_pad, 2 * TT), lambda n, t: (n, 0, t))
    w_spec = pl.BlockSpec((C_out, KC_pad), lambda n, t: (0, 0))
    flops = 2 * C_out * KC_pad * N * T_tiles * 2 * TT
    slab_bytes = slab.size * 2 + w_flat.size * 2

    # ---- pass 1: per-(n, tile) partial BN statistics (both grid axes parallel) -----------
    s1, s2 = pl.pallas_call(
        partial(_stats_kernel, TT=TT, n_even=n_even, n_odd=n_odd),
        out_shape=(jax.ShapeDtypeStruct((N, T_tiles, C_out, 1), jnp.float32),
                   jax.ShapeDtypeStruct((N, T_tiles, C_out, 1), jnp.float32)),
        grid=grid,
        in_specs=[x_spec, w_spec],
        out_specs=[pl.BlockSpec((1, 1, C_out, 1), lambda n, t: (n, t, 0, 0)),
                   pl.BlockSpec((1, 1, C_out, 1), lambda n, t: (n, t, 0, 0))],
        compiler_params=pltpu.CompilerParams(
            dimension_semantics=("parallel", "parallel"),
            vmem_limit_bytes=32 * 1024 * 1024),
        cost_estimate=pl.CostEstimate(flops=flops, transcendentals=0,
                                      bytes_accessed=slab_bytes + 2 * N * T_tiles * C_out * 4),
    )(slab, w_flat)

    # ---- O(C_out) glue: biased batch variance -> BN scale / shift (f32) ------------------
    # TODO(synk): E[y^2]-E[y]^2 can cancel for inputs with a large DC offset; subtract a
    # per-channel pilot shift before accumulating squares if that regime ever matters.
    cnt = float(N * L_out)
    mean = jnp.sum(s1, axis=(0, 1))[:, 0] / cnt
    var = jnp.maximum(jnp.sum(s2, axis=(0, 1))[:, 0] / cnt - mean * mean, 0.0)
    scale = gamma.astype(jnp.float32) * jax.lax.rsqrt(var + eps)
    shift = beta.astype(jnp.float32) - mean * scale

    # ---- pass 2: conv + BN affine + ReLU + max-pool, lane-dense (N, C_out, Lp) output ----
    # TODO(synk): emit bf16 output if the downstream consumer tolerates it (halves HBM write).
    out = pl.pallas_call(
        partial(_fused_kernel, TT=TT),
        out_shape=jax.ShapeDtypeStruct((N, C_out, Lp_pad), jnp.float32),
        grid=grid,
        in_specs=[x_spec, w_spec,
                  pl.BlockSpec((C_out, 1), lambda n, t: (0, 0)),
                  pl.BlockSpec((C_out, 1), lambda n, t: (0, 0))],
        out_specs=pl.BlockSpec((1, C_out, TT), lambda n, t: (n, 0, t)),
        compiler_params=pltpu.CompilerParams(
            dimension_semantics=("parallel", "parallel"),
            vmem_limit_bytes=32 * 1024 * 1024),
        cost_estimate=pl.CostEstimate(flops=flops + 6 * N * C_out * Lp_pad,
                                      transcendentals=0,
                                      bytes_accessed=slab_bytes + N * C_out * Lp_pad * 4),
    )(slab, w_flat, scale.reshape(C_out, 1), shift.reshape(C_out, 1))

    return out[:, :, :Lp]


def _reference(x, weight, bias, gamma, beta, *, stride, padding, eps=1e-5):
    """Pure-JAX f32 reference reproducing the PyTorch forward (incl. conv bias)."""
    y = jax.lax.conv_general_dilated(
        x, weight, (stride,), [(padding, padding)],
        dimension_numbers=("NCH", "OIH", "NCH"),
        precision=jax.lax.Precision.HIGHEST)
    y = y + bias[None, :, None]
    mean = y.mean(axis=(0, 2), keepdims=True)
    var = ((y - mean) ** 2).mean(axis=(0, 2), keepdims=True)
    y = (y - mean) / jnp.sqrt(var + eps) * gamma[None, :, None] + beta[None, :, None]
    y = jnp.maximum(y, 0.0)
    N, C, Lo = y.shape
    Lp = Lo // 2
    return y[:, :, :2 * Lp].reshape(N, C, Lp, 2).max(axis=-1)


def _run_case(key, N, C_in, L, C_out, K, stride, padding):
    kx, kw, kb, kg, kbt = jax.random.split(key, 5)
    x = jax.random.normal(kx, (N, C_in, L), dtype=jnp.float32)
    weight = jax.random.normal(kw, (C_out, C_in, K), dtype=jnp.float32) / jnp.sqrt(C_in * K)
    bias = jax.random.normal(kb, (C_out,), dtype=jnp.float32) * 0.1
    gamma = 1.0 + 0.2 * jax.random.normal(kg, (C_out,), dtype=jnp.float32)
    beta = 0.2 * jax.random.normal(kbt, (C_out,), dtype=jnp.float32)

    out = cnn_feature_extractor(x, weight, bias, gamma, beta, stride=stride, padding=padding)
    out = jax.block_until_ready(out)
    ref = _reference(x, weight, bias, gamma, beta, stride=stride, padding=padding)
    # Tolerance loosened slightly (per review) because the conv runs with bf16 MXU inputs
    # (f32 accumulation); contraction dim is only K*C_in so the error stays small.
    np.testing.assert_allclose(np.asarray(out), np.asarray(ref), rtol=5e-2, atol=5e-2)


if __name__ == "__main__":
    key = jax.random.PRNGKey(0)
    k1, k2, k3 = jax.random.split(key, 3)
    # Small shapes consistent with the module: Conv1d(in=4, out=16, k=3, stride, pad)
    _run_case(k1, N=2, C_in=4, L=16, C_out=16, K=3, stride=1, padding=1)   # even L_out
    _run_case(k2, N=2, C_in=4, L=17, C_out=16, K=3, stride=1, padding=1)   # odd L_out (pool drops tail)
    _run_case(k3, N=2, C_in=4, L=16, C_out=16, K=3, stride=2, padding=1)   # strided conv
    print("KERNEL_OK")
</pallas_src>

<mosaic_0001>
module attributes {stable_mosaic.version = 11 : i64} {
  func.func @_stats_kernel(%arg0: i32, %arg1: i32, %arg2: memref<1x16x256xbf16, #tpu.memory_space<vmem>>, %arg3: memref<16x16xbf16, #tpu.memory_space<vmem>>, %arg4: memref<1x1x16x1xf32, #tpu.memory_space<vmem>>, %arg5: memref<1x1x16x1xf32, #tpu.memory_space<vmem>>) attributes {dimension_semantics = [#tpu.dimension_semantics<parallel>, #tpu.dimension_semantics<parallel>], iteration_bounds = array<i64: 2, 1>, scalar_prefetch = 0 : i64, scratch_operands = 0 : i64, tpu.core_type = #tpu.core_type<tc>, window_params = [{transform_indices = @transform_0, window_bounds = array<i64: 1, 16, 256>}, {pipeline_mode = #tpu.pipeline_mode<synchronous>, transform_indices = @transform_1, window_bounds = array<i64: 16, 16>}, {transform_indices = @transform_2, window_bounds = array<i64: 1, 1, 16, 1>}, {transform_indices = @transform_3, window_bounds = array<i64: 1, 1, 16, 1>}]} {
    %c0 = arith.constant 0 : index
    %c0_0 = arith.constant 0 : index
    %0 = vector.load %arg3[%c0, %c0_0] : memref<16x16xbf16, #tpu.memory_space<vmem>>, vector<16x16xbf16>
    %c0_1 = arith.constant 0 : index
    %c0_2 = arith.constant 0 : index
    %c0_3 = arith.constant 0 : index
    %1 = vector.load %arg2[%c0_1, %c0_2, %c0_3] : memref<1x16x256xbf16, #tpu.memory_space<vmem>>, vector<1x16x256xbf16>
    %2 = vector.shape_cast %1 : vector<1x16x256xbf16> to vector<16x256xbf16>
    %cst = arith.constant dense<0.000000e+00> : vector<16x256xf32>
    %3 = tpu.matmul %0, %2, %cst {dimension_numbers = #tpu.dot_dimension_numbers<[1], [0], [0], [1], [0, 0, 1, 1], [], []>} : vector<16x16xbf16>, vector<16x256xbf16>, vector<16x256xf32> -> vector<16x256xf32>
    %4 = tpu.iota {dimensions = array<i32: 1>} : vector<1x256xi32>
    %c128_i32 = arith.constant 128 : i32
    %5 = arith.muli %arg1, %c128_i32 : i32
    %c128_i32_4 = arith.constant 128 : i32
    %6 = vector.broadcast %c128_i32_4 : i32 to vector<1x256xi32>
    %7 = arith.cmpi slt, %4, %6 : vector<1x256xi32>
    %c128_i32_5 = arith.constant 128 : i32
    %8 = vector.broadcast %c128_i32_5 : i32 to vector<1x256xi32>
    %9 = arith.subi %4, %8 : vector<1x256xi32>
    %10 = arith.select %7, %4, %9 : vector<1x256xi1>, vector<1x256xi32>
    %11 = vector.broadcast %5 : i32 to vector<1x256xi32>
    %12 = arith.addi %11, %10 : vector<1x256xi32>
    %c128_i32_6 = arith.constant 128 : i32
    %13 = vector.broadcast %c128_i32_6 : i32 to vector<1x256xi32>
    %14 = arith.cmpi slt, %4, %13 : vector<1x256xi32>
    %c8_i32 = arith.constant 8 : i32
    %c8_i32_7 = arith.constant 8 : i32
    %15 = vector.broadcast %c8_i32 : i32 to vector<1x256xi32>
    %16 = vector.broadcast %c8_i32_7 : i32 to vector<1x256xi32>
    %17 = arith.select %14, %15, %16 : vector<1x256xi1>, vector<1x256xi32>
    %18 = arith.cmpi slt, %12, %17 : vector<1x256xi32>
    %cst_8 = arith.constant 0.000000e+00 : f32
    %19 = vector.shape_cast %18 : vector<1x256xi1> to vector<1x256xi1>
    %20 = vector.broadcast %19 : vector<1x256xi1> to vector<16x256xi1>
    %21 = vector.broadcast %cst_8 : f32 to vector<16x256xf32>
    %22 = arith.select %20, %3, %21 : vector<16x256xi1>, vector<16x256xf32>
    %cst_9 = arith.constant dense<0.000000e+00> : vector<16xf32>
    %23 = vector.multi_reduction <add>, %22, %cst_9 [1] : vector<16x256xf32> to vector<16xf32>
    %24 = vector.shape_cast %23 : vector<16xf32> to vector<16x1xf32>
    %c0_10 = arith.constant 0 : index
    %c0_11 = arith.constant 0 : index
    %c0_12 = arith.constant 0 : index
    %c0_13 = arith.constant 0 : index
    %25 = vector.load %arg4[%c0_10, %c0_11, %c0_12, %c0_13] : memref<1x1x16x1xf32, #tpu.memory_space<vmem>>, vector<1x1x16x1xf32>
    %26 = vector.shape_cast %25 : vector<1x1x16x1xf32> to vector<16x1xf32>
    %27 = vector.shape_cast %24 : vector<16x1xf32> to vector<1x1x16x1xf32>
    tpu.vector_store %arg4[%c0_10, %c0_11, %c0_12, %c0_13], %27 {strides = array<i32>} : memref<1x1x16x1xf32, #tpu.memory_space<vmem>>, vector<1x1x16x1xf32>,
    %28 = arith.mulf %22, %22 : vector<16x256xf32>
    %cst_14 = arith.constant dense<0.000000e+00> : vector<16xf32>
    %29 = vector.multi_reduction <add>, %28, %cst_14 [1] : vector<16x256xf32> to vector<16xf32>
    %30 = vector.shape_cast %29 : vector<16xf32> to vector<16x1xf32>
    %c0_15 = arith.constant 0 : index
    %c0_16 = arith.constant 0 : index
    %c0_17 = arith.constant 0 : index
    %c0_18 = arith.constant 0 : index
    %31 = vector.load %arg5[%c0_15, %c0_16, %c0_17, %c0_18] : memref<1x1x16x1xf32, #tpu.memory_space<vmem>>, vector<1x1x16x1xf32>
    %32 = vector.shape_cast %31 : vector<1x1x16x1xf32> to vector<16x1xf32>
    %33 = vector.shape_cast %30 : vector<16x1xf32> to vector<1x1x16x1xf32>
    tpu.vector_store %arg5[%c0_15, %c0_16, %c0_17, %c0_18], %33 {strides = array<i32>} : memref<1x1x16x1xf32, #tpu.memory_space<vmem>>, vector<1x1x16x1xf32>,
    return
  }
  func.func @transform_0(%arg0: i32, %arg1: i32) -> (i32, i32, i32) {
    %c0_i32 = arith.constant 0 : i32
    %c0_i32_0 = arith.constant 0 : i32
    return %arg0, %c0_i32, %arg1 : i32, i32, i32
  }
  func.func @transform_1(%arg0: i32, %arg1: i32) -> (i32, i32) {
    %c0_i32 = arith.constant 0 : i32
    %c0_i32_0 = arith.constant 0 : i32
    %c0_i32_1 = arith.constant 0 : i32
    return %c0_i32, %c0_i32_0 : i32, i32
  }
  func.func @transform_2(%arg0: i32, %arg1: i32) -> (i32, i32, i32, i32) {
    %c0_i32 = arith.constant 0 : i32
    %c0_i32_0 = arith.constant 0 : i32
    %c0_i32_1 = arith.constant 0 : i32
    return %arg0, %arg1, %c0_i32, %c0_i32_0 : i32, i32, i32, i32
  }
  func.func @transform_3(%arg0: i32, %arg1: i32) -> (i32, i32, i32, i32) {
    %c0_i32 = arith.constant 0 : i32
    %c0_i32_0 = arith.constant 0 : i32
    %c0_i32_1 = arith.constant 0 : i32
    return %arg0, %arg1, %c0_i32, %c0_i32_0 : i32, i32, i32, i32
  }
}

module attributes {stable_mosaic.version = 11 : i64} {
  func.func @_fused_kernel(%arg0: i32, %arg1: i32, %arg2: memref<1x16x256xbf16, #tpu.memory_space<vmem>>, %arg3: memref<16x16xbf16, #tpu.memory_space<vmem>>, %arg4: memref<16x1xf32, #tpu.memory_space<vmem>>, %arg5: memref<16x1xf32, #tpu.memory_space<vmem>>, %arg6: memref<1x16x128xf32, #tpu.memory_space<vmem>>) attributes {dimension_semantics = [#tpu.dimension_semantics<parallel>, #tpu.dimension_semantics<parallel>], iteration_bounds = array<i64: 2, 1>, scalar_prefetch = 0 : i64, scratch_operands = 0 : i64, tpu.core_type = #tpu.core_type<tc>, window_params = [{transform_indices = @transform_0, window_bounds = array<i64: 1, 16, 256>}, {pipeline_mode = #tpu.pipeline_mode<synchronous>, transform_indices = @transform_1, window_bounds = array<i64: 16, 16>}, {pipeline_mode = #tpu.pipeline_mode<synchronous>, transform_indices = @transform_2, window_bounds = array<i64: 16, 1>}, {pipeline_mode = #tpu.pipeline_mode<synchronous>, transform_indices = @transform_3, window_bounds = array<i64: 16, 1>}, {transform_indices = @transform_4, window_bounds = array<i64: 1, 16, 128>}]} {
    %c0 = arith.constant 0 : index
    %c0_0 = arith.constant 0 : index
    %0 = vector.load %arg3[%c0, %c0_0] : memref<16x16xbf16, #tpu.memory_space<vmem>>, vector<16x16xbf16>
    %c0_1 = arith.constant 0 : index
    %c0_2 = arith.constant 0 : index
    %c0_3 = arith.constant 0 : index
    %1 = vector.load %arg2[%c0_1, %c0_2, %c0_3] : memref<1x16x256xbf16, #tpu.memory_space<vmem>>, vector<1x16x256xbf16>
    %2 = vector.shape_cast %1 : vector<1x16x256xbf16> to vector<16x256xbf16>
    %cst = arith.constant dense<0.000000e+00> : vector<16x256xf32>
    %3 = tpu.matmul %0, %2, %cst {dimension_numbers = #tpu.dot_dimension_numbers<[1], [0], [0], [1], [0, 0, 1, 1], [], []>} : vector<16x16xbf16>, vector<16x256xbf16>, vector<16x256xf32> -> vector<16x256xf32>
    %c0_4 = arith.constant 0 : index
    %c0_5 = arith.constant 0 : index
    %4 = vector.load %arg4[%c0_4, %c0_5] : memref<16x1xf32, #tpu.memory_space<vmem>>, vector<16x1xf32>
    %5 = vector.broadcast %4 : vector<16x1xf32> to vector<16x256xf32>
    %6 = arith.mulf %3, %5 : vector<16x256xf32>
    %c0_6 = arith.constant 0 : index
    %c0_7 = arith.constant 0 : index
    %7 = vector.load %arg5[%c0_6, %c0_7] : memref<16x1xf32, #tpu.memory_space<vmem>>, vector<16x1xf32>
    %8 = vector.broadcast %7 : vector<16x1xf32> to vector<16x256xf32>
    %9 = arith.addf %6, %8 : vector<16x256xf32>
    %cst_8 = arith.constant 0.000000e+00 : f32
    %10 = vector.broadcast %cst_8 : f32 to vector<16x256xf32>
    %11 = arith.maximumf %9, %10 : vector<16x256xf32>
    %12 = vector.extract_strided_slice %11 {offsets = [0, 0], sizes = [16, 128], strides = [1, 1]} : vector<16x256xf32> to vector<16x128xf32>
    %13 = vector.extract_strided_slice %11 {offsets = [0, 128], sizes = [16, 128], strides = [1, 1]} : vector<16x256xf32> to vector<16x128xf32>
    %14 = arith.maximumf %12, %13 : vector<16x128xf32>
    %c0_9 = arith.constant 0 : index
    %c0_10 = arith.constant 0 : index
    %c0_11 = arith.constant 0 : index
    %15 = vector.load %arg6[%c0_9, %c0_10, %c0_11] : memref<1x16x128xf32, #tpu.memory_space<vmem>>, vector<1x16x128xf32>
    %16 = vector.shape_cast %15 : vector<1x16x128xf32> to vector<16x128xf32>
    %17 = vector.shape_cast %14 : vector<16x128xf32> to vector<1x16x128xf32>
    tpu.vector_store %arg6[%c0_9, %c0_10, %c0_11], %17 {strides = array<i32>} : memref<1x16x128xf32, #tpu.memory_space<vmem>>, vector<1x16x128xf32>,
    return
  }
  func.func @transform_0(%arg0: i32, %arg1: i32) -> (i32, i32, i32) {
    %c0_i32 = arith.constant 0 : i32
    %c0_i32_0 = arith.constant 0 : i32
    return %arg0, %c0_i32, %arg1 : i32, i32, i32
  }
  func.func @transform_1(%arg0: i32, %arg1: i32) -> (i32, i32) {
    %c0_i32 = arith.constant 0 : i32
    %c0_i32_0 = arith.constant 0 : i32
    %c0_i32_1 = arith.constant 0 : i32
    return %c0_i32, %c0_i32_0 : i32, i32
  }
  func.func @transform_2(%arg0: i32, %arg1: i32) -> (i32, i32) {
    %c0_i32 = arith.constant 0 : i32
    %c0_i32_0 = arith.constant 0 : i32
    %c0_i32_1 = arith.constant 0 : i32
    return %c0_i32, %c0_i32_0 : i32, i32
  }
  func.func @transform_3(%arg0: i32, %arg1: i32) -> (i32, i32) {
    %c0_i32 = arith.constant 0 : i32
    %c0_i32_0 = arith.constant 0 : i32
    %c0_i32_1 = arith.constant 0 : i32
    return %c0_i32, %c0_i32_0 : i32, i32
  }
  func.func @transform_4(%arg0: i32, %arg1: i32) -> (i32, i32, i32) {
    %c0_i32 = arith.constant 0 : i32
    %c0_i32_0 = arith.constant 0 : i32
    return %arg0, %c0_i32, %arg1 : i32, i32, i32
  }
}

</mosaic_0001>

<llo_original>
// kernel: cnn_feature_extractor.2
$region0: #{cnn_feature_extractor.2}
  #allocation0 [shape = 'u32[]', space=smem, size = 0x4, offset = 0x4, fixed_abs, tag = 'smem constant byte address 0x4 - core index']
  #allocation1 [shape = 'u32[144,128]{1,0:T(1,128)}', space=vmem, size = 0x12000, scoped, tag = 'internal scratch']
  %s0 = inlined_call_operand.vmem [shape: bf16[2,16,256], index: 0, kind: input, shape index: {}]
  %s1 = inlined_call_operand.vmem [shape: bf16[16,16], index: 1, kind: input, shape index: {}]
  %s2 = inlined_call_operand.vmem [shape: f32[2,1,16,1], index: 2, kind: output, shape index: {0}]
  %s3 = inlined_call_operand.vmem [shape: f32[2,1,16,1], index: 3, kind: output, shape index: {1}]
  %4 = xla_tuple %s2, %s3
  %s5 = sld [smem:[#allocation0]]
  $region49: #{cnn_feature_extractor.2} parent=0
    _
  %s7 = ssub.s32 1, %s5
  %s8 = scalar_select 0, %s7, %s5
  loop: start=0, step=1, limit=4
  $region2: #{cnn_feature_extractor.2} parent=0 // loop_pre_header
    _
  $region3: #{cnn_feature_extractor.2} parent=0 // loop_header
    %s10 = sphi 0, %s14
    %p11 = scmp.ge.s32.totalorder %s10, 4
    %s17 = sphi 0, %s29
    %s18 = sphi 0, %s25
    %s19 = sphi 0, %s17
    %s20 = sphi 0, %s18
    %s21 = sphi 0, %s19
    %s22 = sphi 0, %s20
    %s34 = sphi 0, %s36
    %s37 = sphi 0, %s34
    %s38 = sphi 0, %s37
    %s54 = sphi 0, %s38
    %s58 = sphi 0, %s58
    %s60 = sphi 0, %s58
    %s61 = sphi 0, %s60
    %s75 = sphi 0, %s61
    %s83 = sphi 0, %s85
    %s86 = sphi 0, %s83
    %s87 = sphi 0, %s86
    %s103 = sphi 0, %s87
    %s111 = sphi 0, %s113
    %s114 = sphi 0, %s111
    %s115 = sphi 0, %s114
    %s131 = sphi 0, %s115
  $region4: #{cnn_feature_extractor.2} parent=0 // loop_header_branch
    %13 = sbr.rel (%p11) target = $region8
  $region5: #{cnn_feature_extractor.2} parent=0 // loop_body
    %s15 = ssub.s32 %s10, 1
    %s16 = ssub.s32 %s10, 2
    %s23 = sadd.s32 1, %s18
    %p24 = scmp.ge.s32.totalorder %s23, 1
    %s25 = scalar_select %p24, 0, %s23
    %s26 = sadd.s32 1, %s17
    %s27 = scalar_select %p24, %s26, %s17
    %p28 = scmp.ge.s32.totalorder %s27, 2
    %s29 = scalar_select %p28, 0, %s27
    %s30 = ssub.s32 %s17, %s29
    %s31 = ssub.s32 %s18, %s25
    %s32 = sor.u32 %s30, %s31
    %p33 = scmp.eq.s32.totalorder %s32, 0
    %s35 = sadd.s32 %s34, 1
    %s36 = scalar_select %p33, %s34, %s35
    %p39 = pneg %p33
    %p40 = scmp.eq.s32.totalorder %s10, 1
    %p41 = por %p39, %p40
    %p42 = scmp.ne.s32.totalorder %s34, %s37
    %p43 = scmp.eq.s32.totalorder %s10, 0
    %p44 = por %p42, %p43
    %p45 = scmp.ne.s32.totalorder %s34, %s37
    %p46 = scmp.eq.s32.totalorder %s15, 1
    %p47 = por %p45, %p46
    %p48 = scmp.ne.s32.totalorder %s37, %s38
    %p49 = scmp.eq.s32.totalorder %s15, 0
    %p50 = por %p48, %p49
    %p51 = scmp.ne.s32.totalorder %s37, %s38
    %p52 = scmp.eq.s32.totalorder %s16, 1
    %p53 = por %p51, %p52
    %p55 = scmp.ne.s32.totalorder %s38, %s54
    %p56 = scmp.eq.s32.totalorder %s16, 0
    %p57 = por %p55, %p56
    %s59 = sadd.s32 %s58, 1
    %p62 = scmp.eq.s32.totalorder %s10, 1
    %p63 = scmp.ne.s32.totalorder %s58, %s60
    %p64 = scmp.eq.s32.totalorder %s10, 0
    %p65 = por %p63, %p64
    %p66 = scmp.ne.s32.totalorder %s58, %s60
    %p67 = scmp.eq.s32.totalorder %s15, 1
    %p68 = por %p66, %p67
    %p69 = scmp.ne.s32.totalorder %s60, %s61
    %p70 = scmp.eq.s32.totalorder %s15, 0
    %p71 = por %p69, %p70
    %p72 = scmp.ne.s32.totalorder %s60, %s61
    %p73 = scmp.eq.s32.totalorder %s16, 1
    %p74 = por %p72, %p73
    %p76 = scmp.ne.s32.totalorder %s61, %s75
    %p77 = scmp.eq.s32.totalorder %s16, 0
    %p78 = por %p76, %p77
    %s79 = ssub.s32 %s17, %s29
    %s80 = ssub.s32 %s18, %s25
    %s81 = sor.u32 %s79, %s80
    %p82 = scmp.eq.s32.totalorder %s81, 0
    %s84 = sadd.s32 %s83, 1
    %s85 = scalar_select %p82, %s83, %s84
    %p88 = pneg %p82
    %p89 = scmp.eq.s32.totalorder %s10, 1
    %p90 = por %p88, %p89
    %p91 = scmp.ne.s32.totalorder %s83, %s86
    %p92 = scmp.eq.s32.totalorder %s10, 0
    %p93 = por %p91, %p92
    %p94 = scmp.ne.s32.totalorder %s83, %s86
    %p95 = scmp.eq.s32.totalorder %s15, 1
    %p96 = por %p94, %p95
    %p97 = scmp.ne.s32.totalorder %s86, %s87
    %p98 = scmp.eq.s32.totalorder %s15, 0
    %p99 = por %p97, %p98
    %p100 = scmp.ne.s32.totalorder %s86, %s87
    %p101 = scmp.eq.s32.totalorder %s16, 1
    %p102 = por %p100, %p101
    %p104 = scmp.ne.s32.totalorder %s87, %s103
    %p105 = scmp.eq.s32.totalorder %s16, 0
    %p106 = por %p104, %p105
    %s107 = ssub.s32 %s17, %s29
    %s108 = ssub.s32 %s18, %s25
    %s109 = sor.u32 %s107, %s108
    %p110 = scmp.eq.s32.totalorder %s109, 0
    %s112 = sadd.s32 %s111, 1
    %s113 = scalar_select %p110, %s111, %s112
    %p116 = pneg %p110
    %p117 = scmp.eq.s32.totalorder %s10, 1
    %p118 = por %p116, %p117
    %p119 = scmp.ne.s32.totalorder %s111, %s114
    %p120 = scmp.eq.s32.totalorder %s10, 0
    %p121 = por %p119, %p120
    %p122 = scmp.ne.s32.totalorder %s111, %s114
    %p123 = scmp.eq.s32.totalorder %s15, 1
    %p124 = por %p122, %p123
    %p125 = scmp.ne.s32.totalorder %s114, %s115
    %p126 = scmp.eq.s32.totalorder %s15, 0
    %p127 = por %p125, %p126
    %p128 = scmp.ne.s32.totalorder %s114, %s115
    %p129 = scmp.eq.s32.totalorder %s16, 1
    %p130 = por %p128, %p129
    %p132 = scmp.ne.s32.totalorder %s115, %s131
    %p133 = scmp.eq.s32.totalorder %s16, 0
    %p134 = por %p132, %p133
    %p135 = scmp.le.s32.totalorder 1, %s10
    %p136 = scmp.lt.s32.totalorder %s10, 3
    %p137 = pnand %p135, %p136
    %p138 = pneg %p137
    // Predicated region
    $region9: #{cnn_feature_extractor.2} parent=5 // pred_check
      _
    $region10: #{cnn_feature_extractor.2} parent=5 // pred_check_branch
      %140 = sbr.rel (%p137) target = $region12
    $region11: #{cnn_feature_extractor.2} parent=5 // pred_region
      %s141 = ssub.s32 %s10, 1
      // Predicated region
      $region13: #{cnn_feature_extractor.2} parent=11 // pred_check
        %p142 = pneg %p71
      $region14: #{cnn_feature_extractor.2} parent=11 // pred_check_branch
        %144 = sbr.rel (%p142) target = $region16
      $region15: #{cnn_feature_extractor.2} parent=11 // pred_region
        _
      $region16: #{cnn_feature_extractor.2} parent=11 // pred_fallthru
        _
    $region12: #{cnn_feature_extractor.2} parent=5 // pred_fallthru
      _
    %p145 = scmp.lt.s32.totalorder %s10, 2
    // Predicated region
    $region17: #{cnn_feature_extractor.2} parent=5 // pred_check
      %p146 = pneg %p145
    $region18: #{cnn_feature_extractor.2} parent=5 // pred_check_branch
      %148 = sbr.rel (%p146) target = $region20
    $region19: #{cnn_feature_extractor.2} parent=5 // pred_region
      // Predicated region
      $region21: #{cnn_feature_extractor.2} parent=19 // pred_check
        %p149 = pneg %p44
      $region22: #{cnn_feature_extractor.2} parent=19 // pred_check_branch
        %151 = sbr.rel (%p149) target = $region24
      $region23: #{cnn_feature_extractor.2} parent=19 // pred_region
        %s152 = smul.u32 2, %s18
        %p153 = scmp.lt.s32.totalorder %s17, 1
        %s154 = scalar_select %p153, %s17, 1
        %p155 = scmp.lt.s32.totalorder %s152, 1
        %s156 = scalar_select %p155, %s152, 1
        %s157 = smul.addr %s154, 4
        %s158 = sadd.s32 %s156, %s157
        %s159 = smul.addr %s158, 4
        %s160 = scalar_lea.vmem %s0, %s159
        %s161 = smul.u32 2, %s18
      $region24: #{cnn_feature_extractor.2} parent=19 // pred_fallthru
        _
    $region20: #{cnn_feature_extractor.2} parent=5 // pred_fallthru
      _
    %p162 = scmp.le.s32.totalorder 1, %s10
    %p163 = scmp.lt.s32.totalorder %s10, 3
    %p164 = pnand %p162, %p163
    %p165 = pneg %p164
    // Predicated region
    $region25: #{cnn_feature_extractor.2} parent=5 // pred_check
      _
    $region26: #{cnn_feature_extractor.2} parent=5 // pred_check_branch
      %167 = sbr.rel (%p164) target = $region28
    $region27: #{cnn_feature_extractor.2} parent=5 // pred_region
      %s168 = ssub.s32 %s10, 1
      %s169 = smul.u32 2, %s20
      %p170 = scmp.lt.s32.totalorder %s19, 1
      %s171 = scalar_select %p170, %s19, 1
      %p172 = scmp.lt.s32.totalorder %s169, 1
      %s173 = scalar_select %p172, %s169, 1
      %s174 = smul.addr %s171, 4
      %s175 = sadd.s32 %s173, %s174
      %s176 = smul.addr %s175, 4
      %s177 = scalar_lea.vmem %s0, %s176
      %p178 = pneg %p50
      %p179 = pneg %p47
      %p180 = pneg %p71
      %p181 = pneg %p68
      %p182 = pneg %p99
      %p183 = pneg %p96
      %p184 = scmp.lt.s32.totalorder %s19, 1
      %s185 = scalar_select %p184, %s19, 1
      %p186 = scmp.lt.s32.totalorder %s20, 0
      %s187 = scalar_select %p186, %s20, 0
      %s188 = smul.addr %s187, 2
      %s189 = smul.addr %s185, 2
      %s190 = sadd.s32 %s188, %s189
      %s191 = smul.addr %s190, 8
      %s192 = scalar_lea.vmem %s2, %s191
      %p193 = pneg %p127
      %p194 = pneg %p124
      %p195 = scmp.lt.s32.totalorder %s19, 1
      %s196 = scalar_select %p195, %s19, 1
      %p197 = scmp.lt.s32.totalorder %s20, 0
      %s198 = scalar_select %p197, %s20, 0
      %s199 = smul.addr %s198, 2
      %s200 = smul.addr %s196, 2
      %s201 = sadd.s32 %s199, %s200
      %s202 = smul.addr %s201, 8
      %s203 = scalar_lea.vmem %s3, %s202
      %s204 = smul.u32 2, %s20
      %p205 = scmp.lt.s32.totalorder %s19, 1
      %s206 = scalar_select %p205, %s19, 1
      %p207 = scmp.lt.s32.totalorder %s204, 1
      %s208 = scalar_select %p207, %s204, 1
      %s209 = smul.addr %s206, 4
      %s210 = sadd.s32 %s208, %s209
      %s211 = smul.addr %s210, 4
      %s212 = scalar_lea.vmem %s0, %s211
      %s213 = smul.u32 2, %s20
      %p214 = scmp.lt.s32.totalorder %s19, 1
      %s215 = scalar_select %p214, %s19, 1
      %p216 = scmp.lt.s32.totalorder %s20, 0
      %s217 = scalar_select %p216, %s20, 0
      %s218 = smul.addr %s217, 2
      %s219 = smul.addr %s215, 2
      %s220 = sadd.s32 %s218, %s219
      %s221 = smul.addr %s220, 8
      %s222 = scalar_lea.vmem %s2, %s221
      %p223 = scmp.lt.s32.totalorder %s19, 1
      %s224 = scalar_select %p223, %s19, 1
      %p225 = scmp.lt.s32.totalorder %s20, 0
      %s226 = scalar_select %p225, %s20, 0
      %s227 = smul.addr %s226, 2
      %s228 = smul.addr %s224, 2
      %s229 = sadd.s32 %s227, %s228
      %s230 = smul.addr %s229, 8
      %s231 = scalar_lea.vmem %s3, %s230
      %v233 = vld [vmem:[%s1] sm:$0xf]
      %v234 = vld [vmem:[%s1 + $0x4] sm:$0xf]
      %v235 = vld [vmem:[%s212] sm:$0xff]
      %v236 = vld [vmem:[%s212 + $0x8] sm:$0xff]
      %v239 = vunpack.c.l.b16 %v233
      %v240 = vunpack.c.l.b16 %v234
      %v241 = vpack.c.b16 %v240, %v239
      %v244 = vunpack.c.l.b16 %v235
      %v245 = vunpack.c.h.b16 %v235
      %v246 = vunpack.c.l.b16 %v236
      %v247 = vunpack.c.h.b16 %v236
      %v248 = vpack.c.b16 %v246, %v244
      %v249 = vpack.c.b16 %v247, %v245
      %vm252 = vcmask 130048
      %v254 = vsel %vm252, %v241, 0
      %256 = vmatprep.subr.bf16.mxu0 %v249
      %257 = vmatpush1.bf16.msra.mxu0 %v248
      %258 = vmatprep.subr.bf16.mxu0 0
      %259 = vmatpush1.bf16.msra.mxu0 0
      %260 = vmatprep.subr.bf16.mxu0 0
      %261 = vmatpush1.bf16.msra.mxu0 0
      %262 = vmatprep.subr.bf16.mxu0 0
      %263 = vmatpush1.bf16.msra.mxu0 0
      %264 = vmatprep.subr.bf16.mxu0 0
      %265 = vmatpush1.bf16.msra.mxu0 0
      %266 = vmatprep.subr.bf16.mxu0 0
      %267 = vmatpush1.bf16.msra.mxu0 0
      %268 = vmatprep.subr.bf16.mxu0 0
      %269 = vmatpush1.bf16.msra.mxu0 0
      %270 = vmatprep.subr.bf16.mxu0 0
      %271 = vmatpush1.bf16.msra.mxu0 0
      %272 = vmatprep.subr.bf16.mxu0 0
      %273 = vmatpush1.bf16.msra.mxu0 0
      %274 = vmatprep.subr.bf16.mxu0 0
      %275 = vmatpush1.bf16.msra.mxu0 0
      %276 = vmatprep.subr.bf16.mxu0 0
      %277 = vmatpush1.bf16.msra.mxu0 0
      %278 = vmatprep.subr.bf16.mxu0 0
      %279 = vmatpush1.bf16.msra.mxu0 0
      %280 = vmatprep.subr.bf16.mxu0 0
      %281 = vmatpush1.bf16.msra.mxu0 0
      %282 = vmatprep.subr.bf16.mxu0 0
      %283 = vmatpush1.bf16.msra.mxu0 0
      %284 = vmatprep.subr.bf16.mxu0 0
      %285 = vmatpush1.bf16.msra.mxu0 0
      %286 = vmatprep.subr.bf16.mxu0 0
      %287 = vmatpush1.bf16.msra.mxu0 0
      %288 = vmatprep.mubr.bf16.mxu0 0
      %289 = vmatmul.mubr.bf16.gmra.mrb[0].mxu0 %v254
      %v290 = vpop.f32.mrb[0].mxu0
      %v291 = vadd.f32 0.0, %v290
      %v292 = vpop.f32.mrb[0].mxu0
      %v293 = vadd.f32 0.0, %v292
      %v294 = vpop.f32.mrb[0].mxu0
      %v295 = vadd.f32 0.0, %v294
      %v296 = vpop.f32.mrb[0].mxu0
      %v297 = vadd.f32 0.0, %v296
      %298 = vdwg.mxu0
      %v299 = vlaneseq
      %v300 = vand.u32 %v299, 127
      %v301 = vadd.s32 %v300, 128
      %s302 = smul.u32 %s20, 128
      %vm303 = vcmp.lt.s32.totalorder %v300, 128
      %vm304 = vcmp.lt.s32.totalorder %v301, 128
      %v305 = vsub.s32 %v300, 128
      %v306 = vsel %vm303, %v300, %v305
      %v307 = vsel %vm304, %v301, %v300
      %v308 = vstv %s302
      %v309 = vadd.s32 %v308, %v306
      %v310 = vadd.s32 %v308, %v307
      %vm311 = vcmp.lt.s32.totalorder %v309, 8
      %vm312 = vcmp.lt.s32.totalorder %v310, 8
      %v313 = vsel %vm311, 1, 0
      %v314 = vsel %vm312, 1, 0
      %vm315 = vcmp.eq.s32.totalorder %v313, 1
      %vm316 = vcmp.eq.s32.totalorder %v314, 1
      %v317 = vsel %vm315, %v291, 0.0
      %v318 = vsel %vm316, %v293, 0.0
      %v319 = vsel %vm315, %v295, 0.0
      %v320 = vsel %vm316, %v297, 0.0
      %v321 = vadd.f32 %v317, %v318
      %322 = vadd.xlane.f32.xlu0 %v321
      %v323 = vpop.xlane.xlu0 %322
      %v324 = vadd.f32 %v319, %v320
      %325 = vadd.xlane.f32.xlu0 %v324
      %v326 = vpop.xlane.xlu0 %325
      %vm327 = vcmask 7168
      %328 = vst.msk [vmem:[%s222] sm:$0xff] %vm327, %v323
      %329 = vst.msk [vmem:[%s222 + $0x8] sm:$0xff] %vm327, %v326
      %v330 = vmul.f32 %v317, %v317
      %v331 = vmul.f32 %v318, %v318
      %v332 = vmul.f32 %v319, %v319
      %v333 = vmul.f32 %v320, %v320
      %v334 = vadd.f32 %v330, %v331
      %335 = vadd.xlane.f32.xlu0 %v334
      %v336 = vpop.xlane.xlu0 %335
      %v337 = vadd.f32 %v332, %v333
      %338 = vadd.xlane.f32.xlu0 %v337
      %v339 = vpop.xlane.xlu0 %338
      %340 = vst.msk [vmem:[%s231] sm:$0xff] %vm327, %v336
      %341 = vst.msk [vmem:[%s231 + $0x8] sm:$0xff] %vm327, %v339
      %p342 = scmp.lt.s32.totalorder %s19, 1
      %s343 = scalar_select %p342, %s19, 1
      %p344 = scmp.lt.s32.totalorder %s20, 0
      %s345 = scalar_select %p344, %s20, 0
      %s346 = smul.addr %s345, 2
      %s347 = smul.addr %s343, 2
      %s348 = sadd.s32 %s346, %s347
      %s349 = smul.addr %s348, 8
      %s350 = scalar_lea.vmem %s2, %s349
      %p351 = scmp.lt.s32.totalorder %s19, 1
      %s352 = scalar_select %p351, %s19, 1
      %p353 = scmp.lt.s32.totalorder %s20, 0
      %s354 = scalar_select %p353, %s20, 0
      %s355 = smul.addr %s354, 2
      %s356 = smul.addr %s352, 2
      %s357 = sadd.s32 %s355, %s356
      %s358 = smul.addr %s357, 8
      %s359 = scalar_lea.vmem %s3, %s358
      // Predicated region
      $region29: #{cnn_feature_extractor.2} parent=27 // pred_check
        %p360 = pneg %p96
      $region30: #{cnn_feature_extractor.2} parent=27 // pred_check_branch
        %362 = sbr.rel (%p360) target = $region32
      $region31: #{cnn_feature_extractor.2} parent=27 // pred_region
        _
      $region32: #{cnn_feature_extractor.2} parent=27 // pred_fallthru
        _
      // Predicated region
      $region33: #{cnn_feature_extractor.2} parent=27 // pred_check
        %p363 = pneg %p124
      $region34: #{cnn_feature_extractor.2} parent=27 // pred_check_branch
        %365 = sbr.rel (%p363) target = $region36
      $region35: #{cnn_feature_extractor.2} parent=27 // pred_region
        _
      $region36: #{cnn_feature_extractor.2} parent=27 // pred_fallthru
        _
    $region28: #{cnn_feature_extractor.2} parent=5 // pred_fallthru
      _
    %p366 = scmp.le.s32.totalorder 2, %s10
    // Predicated region
    $region37: #{cnn_feature_extractor.2} parent=5 // pred_check
      %p367 = pneg %p366
    $region38: #{cnn_feature_extractor.2} parent=5 // pred_check_branch
      %369 = sbr.rel (%p367) target = $region40
    $region39: #{cnn_feature_extractor.2} parent=5 // pred_region
      %s370 = ssub.s32 %s10, 2
      // Predicated region
      $region41: #{cnn_feature_extractor.2} parent=39 // pred_check
        %p371 = pneg %p102
      $region42: #{cnn_feature_extractor.2} parent=39 // pred_check_branch
        %373 = sbr.rel (%p371) target = $region44
      $region43: #{cnn_feature_extractor.2} parent=39 // pred_region
        %p374 = scmp.lt.s32.totalorder %s21, 1
        %s375 = scalar_select %p374, %s21, 1
        %p376 = scmp.lt.s32.totalorder %s22, 0
        %s377 = scalar_select %p376, %s22, 0
        %s378 = smul.addr %s377, 2
        %s379 = smul.addr %s375, 2
        %s380 = sadd.s32 %s378, %s379
        %s381 = smul.addr %s380, 8
        %s382 = scalar_lea.vmem %s2, %s381
      $region44: #{cnn_feature_extractor.2} parent=39 // pred_fallthru
        _
      // Predicated region
      $region45: #{cnn_feature_extractor.2} parent=39 // pred_check
        %p383 = pneg %p130
      $region46: #{cnn_feature_extractor.2} parent=39 // pred_check_branch
        %385 = sbr.rel (%p383) target = $region48
      $region47: #{cnn_feature_extractor.2} parent=39 // pred_region
        %p386 = scmp.lt.s32.totalorder %s21, 1
        %s387 = scalar_select %p386, %s21, 1
        %p388 = scmp.lt.s32.totalorder %s22, 0
        %s389 = scalar_select %p388, %s22, 0
        %s390 = smul.addr %s389, 2
        %s391 = smul.addr %s387, 2
        %s392 = sadd.s32 %s390, %s391
        %s393 = smul.addr %s392, 8
        %s394 = scalar_lea.vmem %s3, %s393
      $region48: #{cnn_feature_extractor.2} parent=39 // pred_fallthru
        _
    $region40: #{cnn_feature_extractor.2} parent=5 // pred_fallthru
      _
  $region6: #{cnn_feature_extractor.2} parent=0 // loop_footer
    %s14 = sadd.s32 1, %s10
  $region7: #{cnn_feature_extractor.2} parent=0 // loop_footer_branch
    %9 = sbr.rel target = $region3
  $region8: #{cnn_feature_extractor.2} parent=0 // loop_exit
    _

// kernel: cnn_feature_extractor.3
$region0: #{cnn_feature_extractor.3}
  #allocation0 [shape = 'u32[]', space=smem, size = 0x4, offset = 0x4, fixed_abs, tag = 'smem constant byte address 0x4 - core index']
  #allocation1 [shape = 'u32[144,128]{1,0:T(1,128)}', space=vmem, size = 0x12000, scoped, tag = 'internal scratch']
  %s0 = inlined_call_operand.vmem [shape: bf16[2,16,256], index: 0, kind: input, shape index: {}]
  %s1 = inlined_call_operand.vmem [shape: bf16[16,16], index: 1, kind: input, shape index: {}]
  %s2 = inlined_call_operand.vmem [shape: f32[16,1], index: 2, kind: input, shape index: {}]
  %s3 = inlined_call_operand.vmem [shape: f32[16,1], index: 3, kind: input, shape index: {}]
  %s4 = inlined_call_operand.vmem [shape: f32[2,16,128], index: 4, kind: output, shape index: {}]
  %s5 = sld [smem:[#allocation0]]
  $region49: #{cnn_feature_extractor.3} parent=0
    _
  %s7 = ssub.s32 1, %s5
  %s8 = scalar_select 0, %s7, %s5
  loop: start=0, step=1, limit=4
  $region2: #{cnn_feature_extractor.3} parent=0 // loop_pre_header
    _
  $region3: #{cnn_feature_extractor.3} parent=0 // loop_header
    %s10 = sphi 0, %s14
    %p11 = scmp.ge.s32.totalorder %s10, 4
    %s17 = sphi 0, %s29
    %s18 = sphi 0, %s25
    %s19 = sphi 0, %s17
    %s20 = sphi 0, %s18
    %s21 = sphi 0, %s19
    %s22 = sphi 0, %s20
    %s34 = sphi 0, %s36
    %s37 = sphi 0, %s34
    %s38 = sphi 0, %s37
    %s54 = sphi 0, %s38
    %s58 = sphi 0, %s58
    %s60 = sphi 0, %s58
    %s61 = sphi 0, %s60
    %s75 = sphi 0, %s61
    %s79 = sphi 0, %s79
    %s81 = sphi 0, %s79
    %s82 = sphi 0, %s81
    %s96 = sphi 0, %s82
    %s100 = sphi 0, %s100
    %s102 = sphi 0, %s100
    %s103 = sphi 0, %s102
    %s117 = sphi 0, %s103
    %s125 = sphi 0, %s127
    %s128 = sphi 0, %s125
    %s129 = sphi 0, %s128
    %s145 = sphi 0, %s129
  $region4: #{cnn_feature_extractor.3} parent=0 // loop_header_branch
    %13 = sbr.rel (%p11) target = $region8
  $region5: #{cnn_feature_extractor.3} parent=0 // loop_body
    %s15 = ssub.s32 %s10, 1
    %s16 = ssub.s32 %s10, 2
    %s23 = sadd.s32 1, %s18
    %p24 = scmp.ge.s32.totalorder %s23, 1
    %s25 = scalar_select %p24, 0, %s23
    %s26 = sadd.s32 1, %s17
    %s27 = scalar_select %p24, %s26, %s17
    %p28 = scmp.ge.s32.totalorder %s27, 2
    %s29 = scalar_select %p28, 0, %s27
    %s30 = ssub.s32 %s17, %s29
    %s31 = ssub.s32 %s18, %s25
    %s32 = sor.u32 %s30, %s31
    %p33 = scmp.eq.s32.totalorder %s32, 0
    %s35 = sadd.s32 %s34, 1
    %s36 = scalar_select %p33, %s34, %s35
    %p39 = pneg %p33
    %p40 = scmp.eq.s32.totalorder %s10, 1
    %p41 = por %p39, %p40
    %p42 = scmp.ne.s32.totalorder %s34, %s37
    %p43 = scmp.eq.s32.totalorder %s10, 0
    %p44 = por %p42, %p43
    %p45 = scmp.ne.s32.totalorder %s34, %s37
    %p46 = scmp.eq.s32.totalorder %s15, 1
    %p47 = por %p45, %p46
    %p48 = scmp.ne.s32.totalorder %s37, %s38
    %p49 = scmp.eq.s32.totalorder %s15, 0
    %p50 = por %p48, %p49
    %p51 = scmp.ne.s32.totalorder %s37, %s38
    %p52 = scmp.eq.s32.totalorder %s16, 1
    %p53 = por %p51, %p52
    %p55 = scmp.ne.s32.totalorder %s38, %s54
    %p56 = scmp.eq.s32.totalorder %s16, 0
    %p57 = por %p55, %p56
    %s59 = sadd.s32 %s58, 1
    %p62 = scmp.eq.s32.totalorder %s10, 1
    %p63 = scmp.ne.s32.totalorder %s58, %s60
    %p64 = scmp.eq.s32.totalorder %s10, 0
    %p65 = por %p63, %p64
    %p66 = scmp.ne.s32.totalorder %s58, %s60
    %p67 = scmp.eq.s32.totalorder %s15, 1
    %p68 = por %p66, %p67
    %p69 = scmp.ne.s32.totalorder %s60, %s61
    %p70 = scmp.eq.s32.totalorder %s15, 0
    %p71 = por %p69, %p70
    %p72 = scmp.ne.s32.totalorder %s60, %s61
    %p73 = scmp.eq.s32.totalorder %s16, 1
    %p74 = por %p72, %p73
    %p76 = scmp.ne.s32.totalorder %s61, %s75
    %p77 = scmp.eq.s32.totalorder %s16, 0
    %p78 = por %p76, %p77
    %s80 = sadd.s32 %s79, 1
    %p83 = scmp.eq.s32.totalorder %s10, 1
    %p84 = scmp.ne.s32.totalorder %s79, %s81
    %p85 = scmp.eq.s32.totalorder %s10, 0
    %p86 = por %p84, %p85
    %p87 = scmp.ne.s32.totalorder %s79, %s81
    %p88 = scmp.eq.s32.totalorder %s15, 1
    %p89 = por %p87, %p88
    %p90 = scmp.ne.s32.totalorder %s81, %s82
    %p91 = scmp.eq.s32.totalorder %s15, 0
    %p92 = por %p90, %p91
    %p93 = scmp.ne.s32.totalorder %s81, %s82
    %p94 = scmp.eq.s32.totalorder %s16, 1
    %p95 = por %p93, %p94
    %p97 = scmp.ne.s32.totalorder %s82, %s96
    %p98 = scmp.eq.s32.totalorder %s16, 0
    %p99 = por %p97, %p98
    %s101 = sadd.s32 %s100, 1
    %p104 = scmp.eq.s32.totalorder %s10, 1
    %p105 = scmp.ne.s32.totalorder %s100, %s102
    %p106 = scmp.eq.s32.totalorder %s10, 0
    %p107 = por %p105, %p106
    %p108 = scmp.ne.s32.totalorder %s100, %s102
    %p109 = scmp.eq.s32.totalorder %s15, 1
    %p110 = por %p108, %p109
    %p111 = scmp.ne.s32.totalorder %s102, %s103
    %p112 = scmp.eq.s32.totalorder %s15, 0
    %p113 = por %p111, %p112
    %p114 = scmp.ne.s32.totalorder %s102, %s103
    %p115 = scmp.eq.s32.totalorder %s16, 1
    %p116 = por %p114, %p115
    %p118 = scmp.ne.s32.totalorder %s103, %s117
    %p119 = scmp.eq.s32.totalorder %s16, 0
    %p120 = por %p118, %p119
    %s121 = ssub.s32 %s17, %s29
    %s122 = ssub.s32 %s18, %s25
    %s123 = sor.u32 %s121, %s122
    %p124 = scmp.eq.s32.totalorder %s123, 0
    %s126 = sadd.s32 %s125, 1
    %s127 = scalar_select %p124, %s125, %s126
    %p130 = pneg %p124
    %p131 = scmp.eq.s32.totalorder %s10, 1
    %p132 = por %p130, %p131
    %p133 = scmp.ne.s32.totalorder %s125, %s128
    %p134 = scmp.eq.s32.totalorder %s10, 0
    %p135 = por %p133, %p134
    %p136 = scmp.ne.s32.totalorder %s125, %s128
    %p137 = scmp.eq.s32.totalorder %s15, 1
    %p138 = por %p136, %p137
    %p139 = scmp.ne.s32.totalorder %s128, %s129
    %p140 = scmp.eq.s32.totalorder %s15, 0
    %p141 = por %p139, %p140
    %p142 = scmp.ne.s32.totalorder %s128, %s129
    %p143 = scmp.eq.s32.totalorder %s16, 1
    %p144 = por %p142, %p143
    %p146 = scmp.ne.s32.totalorder %s129, %s145
    %p147 = scmp.eq.s32.totalorder %s16, 0
    %p148 = por %p146, %p147
    %p149 = scmp.le.s32.totalorder 1, %s10
    %p150 = scmp.lt.s32.totalorder %s10, 3
    %p151 = pnand %p149, %p150
    %p152 = pneg %p151
    // Predicated region
    $region9: #{cnn_feature_extractor.3} parent=5 // pred_check
      _
    $region10: #{cnn_feature_extractor.3} parent=5 // pred_check_branch
      %154 = sbr.rel (%p151) target = $region12
    $region11: #{cnn_feature_extractor.3} parent=5 // pred_region
      %s155 = ssub.s32 %s10, 1
      // Predicated region
      $region13: #{cnn_feature_extractor.3} parent=11 // pred_check
        %p156 = pneg %p71
      $region14: #{cnn_feature_extractor.3} parent=11 // pred_check_branch
        %158 = sbr.rel (%p156) target = $region16
      $region15: #{cnn_feature_extractor.3} parent=11 // pred_region
        _
      $region16: #{cnn_feature_extractor.3} parent=11 // pred_fallthru
        _
      // Predicated region
      $region17: #{cnn_feature_extractor.3} parent=11 // pred_check
        %p159 = pneg %p92
      $region18: #{cnn_feature_extractor.3} parent=11 // pred_check_branch
        %161 = sbr.rel (%p159) target = $region20
      $region19: #{cnn_feature_extractor.3} parent=11 // pred_region
        _
      $region20: #{cnn_feature_extractor.3} parent=11 // pred_fallthru
        _
      // Predicated region
      $region21: #{cnn_feature_extractor.3} parent=11 // pred_check
        %p162 = pneg %p113
      $region22: #{cnn_feature_extractor.3} parent=11 // pred_check_branch
        %164 = sbr.rel (%p162) target = $region24
      $region23: #{cnn_feature_extractor.3} parent=11 // pred_region
        _
      $region24: #{cnn_feature_extractor.3} parent=11 // pred_fallthru
        _
    $region12: #{cnn_feature_extractor.3} parent=5 // pred_fallthru
      _
    %p165 = scmp.lt.s32.totalorder %s10, 2
    // Predicated region
    $region25: #{cnn_feature_extractor.3} parent=5 // pred_check
      %p166 = pneg %p165
    $region26: #{cnn_feature_extractor.3} parent=5 // pred_check_branch
      %168 = sbr.rel (%p166) target = $region28
    $region27: #{cnn_feature_extractor.3} parent=5 // pred_region
      // Predicated region
      $region29: #{cnn_feature_extractor.3} parent=27 // pred_check
        %p169 = pneg %p44
      $region30: #{cnn_feature_extractor.3} parent=27 // pred_check_branch
        %171 = sbr.rel (%p169) target = $region32
      $region31: #{cnn_feature_extractor.3} parent=27 // pred_region
        %s172 = smul.u32 2, %s18
        %p173 = scmp.lt.s32.totalorder %s17, 1
        %s174 = scalar_select %p173, %s17, 1
        %p175 = scmp.lt.s32.totalorder %s172, 1
        %s176 = scalar_select %p175, %s172, 1
        %s177 = smul.addr %s174, 4
        %s178 = sadd.s32 %s176, %s177
        %s179 = smul.addr %s178, 4
        %s180 = scalar_lea.vmem %s0, %s179
        %s181 = smul.u32 2, %s18
      $region32: #{cnn_feature_extractor.3} parent=27 // pred_fallthru
        _
    $region28: #{cnn_feature_extractor.3} parent=5 // pred_fallthru
      _
    %p182 = scmp.le.s32.totalorder 1, %s10
    %p183 = scmp.lt.s32.totalorder %s10, 3
    %p184 = pnand %p182, %p183
    %p185 = pneg %p184
    // Predicated region
    $region33: #{cnn_feature_extractor.3} parent=5 // pred_check
      _
    $region34: #{cnn_feature_extractor.3} parent=5 // pred_check_branch
      %187 = sbr.rel (%p184) target = $region36
    $region35: #{cnn_feature_extractor.3} parent=5 // pred_region
      %s188 = ssub.s32 %s10, 1
      %s189 = smul.u32 2, %s20
      %p190 = scmp.lt.s32.totalorder %s19, 1
      %s191 = scalar_select %p190, %s19, 1
      %p192 = scmp.lt.s32.totalorder %s189, 1
      %s193 = scalar_select %p192, %s189, 1
      %s194 = smul.addr %s191, 4
      %s195 = sadd.s32 %s193, %s194
      %s196 = smul.addr %s195, 4
      %s197 = scalar_lea.vmem %s0, %s196
      %p198 = pneg %p50
      %p199 = pneg %p47
      %p200 = pneg %p71
      %p201 = pneg %p68
      %p202 = pneg %p92
      %p203 = pneg %p89
      %p204 = pneg %p113
      %p205 = pneg %p110
      %p206 = pneg %p141
      %p207 = pneg %p138
      %p208 = scmp.lt.s32.totalorder %s19, 1
      %s209 = scalar_select %p208, %s19, 1
      %p210 = scmp.lt.s32.totalorder %s20, 0
      %s211 = scalar_select %p210, %s20, 0
      %s212 = smul.addr %s209, 2
      %s213 = sadd.s32 %s211, %s212
      %s214 = smul.addr %s213, 8
      %s215 = scalar_lea.vmem %s4, %s214
      %s216 = smul.u32 2, %s20
      %p217 = scmp.lt.s32.totalorder %s19, 1
      %s218 = scalar_select %p217, %s19, 1
      %p219 = scmp.lt.s32.totalorder %s216, 1
      %s220 = scalar_select %p219, %s216, 1
      %s221 = smul.addr %s218, 4
      %s222 = sadd.s32 %s220, %s221
      %s223 = smul.addr %s222, 4
      %s224 = scalar_lea.vmem %s0, %s223
      %s225 = smul.u32 2, %s20
      %p226 = scmp.lt.s32.totalorder %s19, 1
      %s227 = scalar_select %p226, %s19, 1
      %p228 = scmp.lt.s32.totalorder %s20, 0
      %s229 = scalar_select %p228, %s20, 0
      %s230 = smul.addr %s227, 2
      %s231 = sadd.s32 %s229, %s230
      %s232 = smul.addr %s231, 8
      %s233 = scalar_lea.vmem %s4, %s232
      %v235 = vld [vmem:[%s1] sm:$0xf]
      %v236 = vld [vmem:[%s1 + $0x4] sm:$0xf]
      %v237 = vld [vmem:[%s224] sm:$0xff]
      %v238 = vld [vmem:[%s224 + $0x8] sm:$0xff]
      %v241 = vunpack.c.l.b16 %v235
      %v242 = vunpack.c.l.b16 %v236
      %v243 = vpack.c.b16 %v242, %v241
      %v246 = vunpack.c.l.b16 %v237
      %v247 = vunpack.c.h.b16 %v237
      %v248 = vunpack.c.l.b16 %v238
      %v249 = vunpack.c.h.b16 %v238
      %v250 = vpack.c.b16 %v248, %v246
      %v251 = vpack.c.b16 %v249, %v247
      %vm254 = vcmask 130048
      %v256 = vsel %vm254, %v243, 0
      %258 = vmatprep.subr.bf16.mxu0 %v251
      %259 = vmatpush1.bf16.msra.mxu0 %v250
      %260 = vmatprep.subr.bf16.mxu0 0
      %261 = vmatpush1.bf16.msra.mxu0 0
      %262 = vmatprep.subr.bf16.mxu0 0
      %263 = vmatpush1.bf16.msra.mxu0 0
      %264 = vmatprep.subr.bf16.mxu0 0
      %265 = vmatpush1.bf16.msra.mxu0 0
      %266 = vmatprep.subr.bf16.mxu0 0
      %267 = vmatpush1.bf16.msra.mxu0 0
      %268 = vmatprep.subr.bf16.mxu0 0
      %269 = vmatpush1.bf16.msra.mxu0 0
      %270 = vmatprep.subr.bf16.mxu0 0
      %271 = vmatpush1.bf16.msra.mxu0 0
      %272 = vmatprep.subr.bf16.mxu0 0
      %273 = vmatpush1.bf16.msra.mxu0 0
      %274 = vmatprep.subr.bf16.mxu0 0
      %275 = vmatpush1.bf16.msra.mxu0 0
      %276 = vmatprep.subr.bf16.mxu0 0
      %277 = vmatpush1.bf16.msra.mxu0 0
      %278 = vmatprep.subr.bf16.mxu0 0
      %279 = vmatpush1.bf16.msra.mxu0 0
      %280 = vmatprep.subr.bf16.mxu0 0
      %281 = vmatpush1.bf16.msra.mxu0 0
      %282 = vmatprep.subr.bf16.mxu0 0
      %283 = vmatpush1.bf16.msra.mxu0 0
      %284 = vmatprep.subr.bf16.mxu0 0
      %285 = vmatpush1.bf16.msra.mxu0 0
      %286 = vmatprep.subr.bf16.mxu0 0
      %287 = vmatpush1.bf16.msra.mxu0 0
      %288 = vmatprep.subr.bf16.mxu0 0
      %289 = vmatpush1.bf16.msra.mxu0 0
      %290 = vmatprep.mubr.bf16.mxu0 0
      %291 = vmatmul.mubr.bf16.gmra.mrb[0].mxu0 %v256
      %v292 = vpop.f32.mrb[0].mxu0
      %v293 = vadd.f32 0.0, %v292
      %v294 = vpop.f32.mrb[0].mxu0
      %v295 = vadd.f32 0.0, %v294
      %v296 = vpop.f32.mrb[0].mxu0
      %v297 = vadd.f32 0.0, %v296
      %v298 = vpop.f32.mrb[0].mxu0
      %v299 = vadd.f32 0.0, %v298
      %300 = vdwg.mxu0
      %v301 = vld [vmem:[%s2] sm:$0xff]
      %v302 = vld [vmem:[%s2 + $0x8] sm:$0xff]
      %304 = vset.pattern.permute.xlu0 0
      %305 = vperm.xlu0 %304, %v301
      %v306 = vpop.permute.xlu0 %305
      %309 = vset.pattern.permute.xlu0 0
      %310 = vperm.xlu0 %309, %v302
      %v311 = vpop.permute.xlu0 %310
      %v313 = vmul.f32 %v293, %v306
      %v314 = vmul.f32 %v295, %v306
      %v315 = vmul.f32 %v297, %v311
      %v316 = vmul.f32 %v299, %v311
      %v317 = vld [vmem:[%s3] sm:$0xff]
      %v318 = vld [vmem:[%s3 + $0x8] sm:$0xff]
      %320 = vset.pattern.permute.xlu0 0
      %321 = vperm.xlu0 %320, %v317
      %v322 = vpop.permute.xlu0 %321
      %325 = vset.pattern.permute.xlu0 0
      %326 = vperm.xlu0 %325, %v318
      %v327 = vpop.permute.xlu0 %326
      %v329 = vadd.f32 %v313, %v322
      %v330 = vadd.f32 %v314, %v322
      %v331 = vadd.f32 %v315, %v327
      %v332 = vadd.f32 %v316, %v327
      %v333 = vmax.f32 %v329, 0.0
      %v334 = vmax.f32 %v330, 0.0
      %v335 = vmax.f32 %v331, 0.0
      %v336 = vmax.f32 %v332, 0.0
      %v337 = vmax.f32 %v333, %v334
      %v338 = vmax.f32 %v335, %v336
      %339 = vst [vmem:[%s233] sm:$0xff] %v337
      %340 = vst [vmem:[%s233 + $0x8] sm:$0xff] %v338
      %p341 = scmp.lt.s32.totalorder %s19, 1
      %s342 = scalar_select %p341, %s19, 1
      %p343 = scmp.lt.s32.totalorder %s20, 0
      %s344 = scalar_select %p343, %s20, 0
      %s345 = smul.addr %s342, 2
      %s346 = sadd.s32 %s344, %s345
      %s347 = smul.addr %s346, 8
      %s348 = scalar_lea.vmem %s4, %s347
      // Predicated region
      $region37: #{cnn_feature_extractor.3} parent=35 // pred_check
        %p349 = pneg %p138
      $region38: #{cnn_feature_extractor.3} parent=35 // pred_check_branch
        %351 = sbr.rel (%p349) target = $region40
      $region39: #{cnn_feature_extractor.3} parent=35 // pred_region
        _
      $region40: #{cnn_feature_extractor.3} parent=35 // pred_fallthru
        _
    $region36: #{cnn_feature_extractor.3} parent=5 // pred_fallthru
      _
    %p352 = scmp.le.s32.totalorder 2, %s10
    // Predicated region
    $region41: #{cnn_feature_extractor.3} parent=5 // pred_check
      %p353 = pneg %p352
    $region42: #{cnn_feature_extractor.3} parent=5 // pred_check_branch
      %355 = sbr.rel (%p353) target = $region44
    $region43: #{cnn_feature_extractor.3} parent=5 // pred_region
      %s356 = ssub.s32 %s10, 2
      // Predicated region
      $region45: #{cnn_feature_extractor.3} parent=43 // pred_check
        %p357 = pneg %p144
      $region46: #{cnn_feature_extractor.3} parent=43 // pred_check_branch
        %359 = sbr.rel (%p357) target = $region48
      $region47: #{cnn_feature_extractor.3} parent=43 // pred_region
        %p360 = scmp.lt.s32.totalorder %s21, 1
        %s361 = scalar_select %p360, %s21, 1
        %p362 = scmp.lt.s32.totalorder %s22, 0
        %s363 = scalar_select %p362, %s22, 0
        %s364 = smul.addr %s361, 2
        %s365 = sadd.s32 %s363, %s364
        %s366 = smul.addr %s365, 8
        %s367 = scalar_lea.vmem %s4, %s366
      $region48: #{cnn_feature_extractor.3} parent=43 // pred_fallthru
        _
    $region44: #{cnn_feature_extractor.3} parent=5 // pred_fallthru
      _
  $region6: #{cnn_feature_extractor.3} parent=0 // loop_footer
    %s14 = sadd.s32 1, %s10
  $region7: #{cnn_feature_extractor.3} parent=0 // loop_footer_branch
    %9 = sbr.rel target = $region3
  $region8: #{cnn_feature_extractor.3} parent=0 // loop_exit
    _

</llo_original>
